<compile_context>
chip_gen: v7x
topology: tpu7x:2x2x1
jax: 0.10.0
libtpu: 0.0.40
codegen_flags: <defaults>
</compile_context>

<pallas_src>
import jax
import jax.numpy as jnp
from jax.experimental import pallas as pl
from jax.experimental.pallas import tpu as pltpu

_LANE = 128     # last dim of every block is a multiple of the 128-lane axis
_SUBLANE = 8    # second-to-last dim multiple (f32 sublane height)


def _round_up(n, m):
    return ((n + m - 1) // m) * m


def _fc_classifier_kernel(x_ref, mask_ref, w1_ref, b1_ref, w2_ref, b2_ref, out_ref):
    # fc1: x @ W1 + b1 (MXU, f32 accumulation)
    h = jnp.dot(x_ref[...], w1_ref[...], preferred_element_type=jnp.float32)
    h = h + b1_ref[...]

    # ReLU (VPU)
    h = jnp.maximum(h, 0.0)

    # dropout(p=0.5), training semantics: mask is {0,1} f32; the 1/(1-p) survivor
    # scale is folded into w2 on the host, so this is one VPU multiply.
    h = h * mask_ref[...]

    # fc2: h @ W2' + b2 (W2' already carries the dropout scale when training)
    y = jnp.dot(h, w2_ref[...], preferred_element_type=jnp.float32) + b2_ref[...]
    out_ref[...] = y.astype(out_ref.dtype)


def fc_classifier(x, w1, b1, w2, b2, *, dropout_key, p=0.5, training=True,
                  block_b=256):
    """Forward pass of FcClassifier.

    x:  (B, F)      activations
    w1: (F, F)      fc1 weight, stored (in_features, out_features)
    b1: (F,)        fc1 bias
    w2: (F, C)      fc2 weight, stored (in_features, out_features)
    b2: (C,)        fc2 bias
    dropout_key:    jax PRNG key — vary per training step / per shard
    """
    B, F = x.shape
    Fin, C = w2.shape
    assert w1.shape == (F, F) and b1.shape == (F,) and Fin == F and b2.shape == (C,)

    # Lane/sublane-aligned padded sizes.
    Fp = _round_up(F, _LANE)
    Cp = _round_up(C, _LANE)
    TB = min(block_b, _round_up(B, _SUBLANE))   # batch tile (rows per grid step)
    Bp = _round_up(B, TB)

    out_dtype = x.dtype

    def pad2(a, rows, cols):
        return jnp.pad(a, ((0, rows - a.shape[0]), (0, cols - a.shape[1])))

    # Zero-pad once on the host; padded rows/cols contribute exact zeros and the
    # padded output columns are sliced off at the end.
    # TODO(synk): for large F, cast weights/x to bfloat16 here (keep f32 accumulation).
    xp  = pad2(x.astype(jnp.float32),                 Bp, Fp)
    w1p = pad2(w1.astype(jnp.float32),                Fp, Fp)
    b1p = pad2(b1.reshape(1, F).astype(jnp.float32),  1,  Fp)
    w2p = pad2(w2.astype(jnp.float32),                Fp, Cp)
    b2p = pad2(b2.reshape(1, C).astype(jnp.float32),  1,  Cp)

    if training and p > 0.0:
        keep = jax.random.bernoulli(dropout_key, 1.0 - p, (Bp, Fp))
        mask = keep.astype(jnp.float32)
        w2p = w2p * (1.0 / (1.0 - p))   # fold survivor scaling into fc2 weights
    else:
        mask = jnp.ones((Bp, Fp), jnp.float32)

    grid = (Bp // TB,)

    out_padded = pl.pallas_call(
        _fc_classifier_kernel,
        out_shape=jax.ShapeDtypeStruct((Bp, Cp), out_dtype),
        grid=grid,
        in_specs=[
            pl.BlockSpec((TB, Fp), lambda i: (i, 0)),   # x     : streams over batch
            pl.BlockSpec((TB, Fp), lambda i: (i, 0)),   # mask  : streams with x
            pl.BlockSpec((Fp, Fp), lambda i: (0, 0)),   # w1    : VMEM-resident
            pl.BlockSpec((1,  Fp), lambda i: (0, 0)),   # b1    : VMEM-resident
            pl.BlockSpec((Fp, Cp), lambda i: (0, 0)),   # w2    : VMEM-resident
            pl.BlockSpec((1,  Cp), lambda i: (0, 0)),   # b2    : VMEM-resident
        ],
        out_specs=pl.BlockSpec((TB, Cp), lambda i: (i, 0)),
        compiler_params=pltpu.CompilerParams(
            dimension_semantics=("parallel",)),         # batch grid splits across TCs
    )(xp, mask, w1p, b1p, w2p, b2p)

    return out_padded[:B, :C]


if __name__ == "__main__":
    # Small shapes implied by the module: batch=8, num_ftrs=32, cls=8
    B, NUM_FTRS, CLS = 8, 32, 8

    key = jax.random.PRNGKey(0)
    kx, kw1, kb1, kw2, kb2, kdrop = jax.random.split(key, 6)

    x = jax.random.normal(kx, (B, NUM_FTRS), dtype=jnp.float32)

    # Deterministic PyTorch-Linear-style uniform init, stored (in, out).
    bound = 1.0 / (NUM_FTRS ** 0.5)
    w1 = jax.random.uniform(kw1, (NUM_FTRS, NUM_FTRS), jnp.float32, -bound, bound)
    b1 = jax.random.uniform(kb1, (NUM_FTRS,),          jnp.float32, -bound, bound)
    w2 = jax.random.uniform(kw2, (NUM_FTRS, CLS),      jnp.float32, -bound, bound)
    b2 = jax.random.uniform(kb2, (CLS,),               jnp.float32, -bound, bound)

    # Training-mode forward (dropout active, matches F.dropout default semantics).
    out = fc_classifier(x, w1, b1, w2, b2, dropout_key=kdrop, training=True)
    jax.block_until_ready(out)
    assert out.shape == (B, CLS)
    assert bool(jnp.all(jnp.isfinite(out)))

    # Eval-mode forward checked against a pure-JAX reference (deterministic path).
    out_eval = fc_classifier(x, w1, b1, w2, b2, dropout_key=kdrop, training=False)
    ref_eval = jnp.maximum(x @ w1 + b1, 0.0) @ w2 + b2
    assert jnp.allclose(out_eval, ref_eval, atol=1e-5, rtol=1e-5)

    print("KERNEL_OK")
</pallas_src>

<mosaic_0001>
module attributes {stable_mosaic.version = 11 : i64} {
  func.func @_fc_classifier_kernel(%arg0: i32, %arg1: memref<8x128xf32, #tpu.memory_space<vmem>>, %arg2: memref<8x128xf32, #tpu.memory_space<vmem>>, %arg3: memref<128x128xf32, #tpu.memory_space<vmem>>, %arg4: memref<1x128xf32, #tpu.memory_space<vmem>>, %arg5: memref<128x128xf32, #tpu.memory_space<vmem>>, %arg6: memref<1x128xf32, #tpu.memory_space<vmem>>, %arg7: memref<8x128xf32, #tpu.memory_space<vmem>>) attributes {dimension_semantics = [#tpu.dimension_semantics<parallel>], iteration_bounds = array<i64: 1>, scalar_prefetch = 0 : i64, scratch_operands = 0 : i64, tpu.core_type = #tpu.core_type<tc>, window_params = [{transform_indices = @transform_0, window_bounds = array<i64: 8, 128>}, {transform_indices = @transform_1, window_bounds = array<i64: 8, 128>}, {pipeline_mode = #tpu.pipeline_mode<synchronous>, transform_indices = @transform_2, window_bounds = array<i64: 128, 128>}, {pipeline_mode = #tpu.pipeline_mode<synchronous>, transform_indices = @transform_3, window_bounds = array<i64: 1, 128>}, {pipeline_mode = #tpu.pipeline_mode<synchronous>, transform_indices = @transform_4, window_bounds = array<i64: 128, 128>}, {pipeline_mode = #tpu.pipeline_mode<synchronous>, transform_indices = @transform_5, window_bounds = array<i64: 1, 128>}, {transform_indices = @transform_6, window_bounds = array<i64: 8, 128>}]} {
    %c0 = arith.constant 0 : index
    %c0_0 = arith.constant 0 : index
    %0 = vector.load %arg1[%c0, %c0_0] : memref<8x128xf32, #tpu.memory_space<vmem>>, vector<8x128xf32>
    %c0_1 = arith.constant 0 : index
    %c0_2 = arith.constant 0 : index
    %1 = vector.load %arg3[%c0_1, %c0_2] : memref<128x128xf32, #tpu.memory_space<vmem>>, vector<128x128xf32>
    %cst = arith.constant dense<0.000000e+00> : vector<8x128xf32>
    %2 = tpu.matmul %0, %1, %cst {dimension_numbers = #tpu.dot_dimension_numbers<[1], [0], [0], [1], [0, 0, 1, 1], [], []>} : vector<8x128xf32>, vector<128x128xf32>, vector<8x128xf32> -> vector<8x128xf32>
    %c0_3 = arith.constant 0 : index
    %c0_4 = arith.constant 0 : index
    %3 = vector.load %arg4[%c0_3, %c0_4] : memref<1x128xf32, #tpu.memory_space<vmem>>, vector<1x128xf32>
    %4 = vector.broadcast %3 : vector<1x128xf32> to vector<8x128xf32>
    %5 = arith.addf %2, %4 : vector<8x128xf32>
    %cst_5 = arith.constant 0.000000e+00 : f32
    %6 = vector.broadcast %cst_5 : f32 to vector<8x128xf32>
    %7 = arith.maximumf %5, %6 : vector<8x128xf32>
    %c0_6 = arith.constant 0 : index
    %c0_7 = arith.constant 0 : index
    %8 = vector.load %arg2[%c0_6, %c0_7] : memref<8x128xf32, #tpu.memory_space<vmem>>, vector<8x128xf32>
    %9 = arith.mulf %7, %8 : vector<8x128xf32>
    %c0_8 = arith.constant 0 : index
    %c0_9 = arith.constant 0 : index
    %10 = vector.load %arg5[%c0_8, %c0_9] : memref<128x128xf32, #tpu.memory_space<vmem>>, vector<128x128xf32>
    %cst_10 = arith.constant dense<0.000000e+00> : vector<8x128xf32>
    %11 = tpu.matmul %9, %10, %cst_10 {dimension_numbers = #tpu.dot_dimension_numbers<[1], [0], [0], [1], [0, 0, 1, 1], [], []>} : vector<8x128xf32>, vector<128x128xf32>, vector<8x128xf32> -> vector<8x128xf32>
    %c0_11 = arith.constant 0 : index
    %c0_12 = arith.constant 0 : index
    %12 = vector.load %arg6[%c0_11, %c0_12] : memref<1x128xf32, #tpu.memory_space<vmem>>, vector<1x128xf32>
    %13 = vector.broadcast %12 : vector<1x128xf32> to vector<8x128xf32>
    %14 = arith.addf %11, %13 : vector<8x128xf32>
    %c0_13 = arith.constant 0 : index
    %c0_14 = arith.constant 0 : index
    %15 = vector.load %arg7[%c0_13, %c0_14] : memref<8x128xf32, #tpu.memory_space<vmem>>, vector<8x128xf32>
    tpu.vector_store %arg7[%c0_13, %c0_14], %14 {strides = array<i32>} : memref<8x128xf32, #tpu.memory_space<vmem>>, vector<8x128xf32>,
    return
  }
  func.func @transform_0(%arg0: i32) -> (i32, i32) {
    %c0_i32 = arith.constant 0 : i32
    %c0_i32_0 = arith.constant 0 : i32
    return %arg0, %c0_i32 : i32, i32
  }
  func.func @transform_1(%arg0: i32) -> (i32, i32) {
    %c0_i32 = arith.constant 0 : i32
    %c0_i32_0 = arith.constant 0 : i32
    return %arg0, %c0_i32 : i32, i32
  }
  func.func @transform_2(%arg0: i32) -> (i32, i32) {
    %c0_i32 = arith.constant 0 : i32
    %c0_i32_0 = arith.constant 0 : i32
    %c0_i32_1 = arith.constant 0 : i32
    return %c0_i32, %c0_i32_0 : i32, i32
  }
  func.func @transform_3(%arg0: i32) -> (i32, i32) {
    %c0_i32 = arith.constant 0 : i32
    %c0_i32_0 = arith.constant 0 : i32
    %c0_i32_1 = arith.constant 0 : i32
    return %c0_i32, %c0_i32_0 : i32, i32
  }
  func.func @transform_4(%arg0: i32) -> (i32, i32) {
    %c0_i32 = arith.constant 0 : i32
    %c0_i32_0 = arith.constant 0 : i32
    %c0_i32_1 = arith.constant 0 : i32
    return %c0_i32, %c0_i32_0 : i32, i32
  }
  func.func @transform_5(%arg0: i32) -> (i32, i32) {
    %c0_i32 = arith.constant 0 : i32
    %c0_i32_0 = arith.constant 0 : i32
    %c0_i32_1 = arith.constant 0 : i32
    return %c0_i32, %c0_i32_0 : i32, i32
  }
  func.func @transform_6(%arg0: i32) -> (i32, i32) {
    %c0_i32 = arith.constant 0 : i32
    %c0_i32_0 = arith.constant 0 : i32
    return %arg0, %c0_i32 : i32, i32
  }
}

</mosaic_0001>

<llo_original>
// kernel: tpu_custom_call.1
$region0: #{tpu_custom_call.1}
  #allocation0 [shape = 'u32[]', space=smem, size = 0x4, offset = 0x4, fixed_abs, tag = 'smem constant byte address 0x4 - core index']
  #allocation1 [shape = 'u32[144,128]{1,0:T(1,128)}', space=vmem, size = 0x12000, scoped, tag = 'internal scratch']
  %s0 = inlined_call_operand.hbm [shape: f32[8,128], index: 0, kind: input, shape index: {}]
  %s1 = inlined_call_operand.hbm [shape: f32[8,128], index: 1, kind: input, shape index: {}]
  %s2 = inlined_call_operand.hbm [shape: f32[128,128], index: 2, kind: input, shape index: {}]
  %s3 = inlined_call_operand.vmem [shape: f32[1,128], index: 3, kind: input, shape index: {}]
  %s4 = inlined_call_operand.hbm [shape: f32[128,128], index: 4, kind: input, shape index: {}]
  %s5 = inlined_call_operand.vmem [shape: f32[1,128], index: 5, kind: input, shape index: {}]
  %s6 = inlined_call_operand.hbm [shape: f32[8,128], index: 6, kind: output, shape index: {}]
  %s7 = sld [smem:[#allocation0]]
  $region50: #{tpu_custom_call.1} parent=0
    _
  %s9 = ssub.s32 1, %s7
  %s10 = scalar_select 0, %s9, %s7
  $region1: #{tpu_custom_call.1} parent=0
    #allocation2 [shape = 'u8[4096]{0}', space=vmem, size = 0x1000, scoped, tag = 'input window, operand 0, single buffered']
    #allocation3 [shape = 's32[1]{0}', space=sflag, size = 0x4, scoped, tag = 'scoped memory for tpu_custom_call.1']
    #allocation4 [shape = 's32[1]{0}', space=sflag, size = 0x4, scoped, tag = 'scoped memory for tpu_custom_call.1']
    #allocation5 [shape = 'u8[4096]{0}', space=vmem, size = 0x1000, scoped, tag = 'input window, operand 1, single buffered']
    #allocation6 [shape = 's32[1]{0}', space=sflag, size = 0x4, scoped, tag = 'scoped memory for tpu_custom_call.1']
    #allocation7 [shape = 'u8[65536]{0}', space=vmem, size = 0x10000, scoped, tag = 'input window, operand 2, single buffered']
    #allocation8 [shape = 'u8[65536]{0}', space=vmem, size = 0x10000, scoped, tag = 'input window, operand 4, single buffered']
    #allocation9 [shape = 's32[1]{0}', space=sflag, size = 0x4, scoped, tag = 'scoped memory for tpu_custom_call.1']
    #allocation10 [shape = 'u8[4096]{0}', space=vmem, size = 0x1000, scoped, tag = 'output window, operand 0, single buffered']
    %11 = vsyncpa [#allocation3], 0
    %12 = vsyncpa [#allocation6], 0
    %13 = vsyncpa [#allocation9], 0
    %14 = vsyncpa [#allocation4], 0
    // Predicated region
    $region2: #{tpu_custom_call.1} parent=1 // pred_check
      _
    $region3: #{tpu_custom_call.1} parent=1 // pred_check_branch
      %16 = sbr.rel (0) target = $region5
    $region4: #{tpu_custom_call.1} parent=1 // pred_region
      %s18 = ssub.s32 128, 128
      %19 = vsyncadd [#allocation3], %s18
      %s21 = sshll.u32 [#allocation2], 4
      %s22 = int_to_ptr.vmem [resolvable:$true] %s21
      %24 = dma.hbm_to_vmem [thread:$0]  %s0, 128, %s22, [#allocation3]
    $region5: #{tpu_custom_call.1} parent=1 // pred_fallthru
      _
    // Predicated region
    $region6: #{tpu_custom_call.1} parent=1 // pred_check
      _
    $region7: #{tpu_custom_call.1} parent=1 // pred_check_branch
      %26 = sbr.rel (0) target = $region9
    $region8: #{tpu_custom_call.1} parent=1 // pred_region
      %s28 = ssub.s32 128, 128
      %29 = vsyncadd [#allocation6], %s28
      %s31 = sshll.u32 [#allocation5], 4
      %s32 = int_to_ptr.vmem [resolvable:$true] %s31
      %34 = dma.hbm_to_vmem [thread:$0]  %s1, 128, %s32, [#allocation6]
    $region9: #{tpu_custom_call.1} parent=1 // pred_fallthru
      _
    // Predicated region
    $region10: #{tpu_custom_call.1} parent=1 // pred_check
      _
    $region11: #{tpu_custom_call.1} parent=1 // pred_check_branch
      %36 = sbr.rel (0) target = $region13
    $region12: #{tpu_custom_call.1} parent=1 // pred_region
      %s38 = ssub.s32 2048, 2048
      %39 = vsyncadd [#allocation6], %s38
      %s40 = sshll.u32 [#allocation7], 4
      %s41 = int_to_ptr.vmem [resolvable:$true] %s40
      %46 = dma.hbm_to_vmem [thread:$0]  %s2, 2048, %s41, [#allocation6], 128, 128, 8
    $region13: #{tpu_custom_call.1} parent=1 // pred_fallthru
      _
    // Predicated region
    $region14: #{tpu_custom_call.1} parent=1 // pred_check
      _
    $region15: #{tpu_custom_call.1} parent=1 // pred_check_branch
      %48 = sbr.rel (0) target = $region17
    $region16: #{tpu_custom_call.1} parent=1 // pred_region
      _
    $region17: #{tpu_custom_call.1} parent=1 // pred_fallthru
      _
    // Predicated region
    $region18: #{tpu_custom_call.1} parent=1 // pred_check
      _
    $region19: #{tpu_custom_call.1} parent=1 // pred_check_branch
      %50 = sbr.rel (0) target = $region21
    $region20: #{tpu_custom_call.1} parent=1 // pred_region
      %s52 = ssub.s32 2048, 2048
      %53 = vsyncadd [#allocation9], %s52
      %s54 = sshll.u32 [#allocation8], 4
      %s55 = int_to_ptr.vmem [resolvable:$true] %s54
      %60 = dma.hbm_to_vmem [thread:$0]  %s4, 2048, %s55, [#allocation9], 128, 128, 8
    $region21: #{tpu_custom_call.1} parent=1 // pred_fallthru
      _
    // Predicated region
    $region22: #{tpu_custom_call.1} parent=1 // pred_check
      _
    $region23: #{tpu_custom_call.1} parent=1 // pred_check_branch
      %62 = sbr.rel (0) target = $region25
    $region24: #{tpu_custom_call.1} parent=1 // pred_region
      _
    $region25: #{tpu_custom_call.1} parent=1 // pred_fallthru
      _
    // Predicated region
    $region26: #{tpu_custom_call.1} parent=1 // pred_check
      _
    $region27: #{tpu_custom_call.1} parent=1 // pred_check_branch
      %64 = sbr.rel (0) target = $region29
    $region28: #{tpu_custom_call.1} parent=1 // pred_region
      %65 = dma.done [#allocation3], 128
    $region29: #{tpu_custom_call.1} parent=1 // pred_fallthru
      _
    // Predicated region
    $region30: #{tpu_custom_call.1} parent=1 // pred_check
      _
    $region31: #{tpu_custom_call.1} parent=1 // pred_check_branch
      %67 = sbr.rel (0) target = $region33
    $region32: #{tpu_custom_call.1} parent=1 // pred_region
      %68 = dma.done [#allocation6], 128
    $region33: #{tpu_custom_call.1} parent=1 // pred_fallthru
      _
    // Predicated region
    $region34: #{tpu_custom_call.1} parent=1 // pred_check
      _
    $region35: #{tpu_custom_call.1} parent=1 // pred_check_branch
      %70 = sbr.rel (0) target = $region37
    $region36: #{tpu_custom_call.1} parent=1 // pred_region
      %71 = dma.done [#allocation6], 2048
    $region37: #{tpu_custom_call.1} parent=1 // pred_fallthru
      _
    // Predicated region
    $region38: #{tpu_custom_call.1} parent=1 // pred_check
      _
    $region39: #{tpu_custom_call.1} parent=1 // pred_check_branch
      %73 = sbr.rel (0) target = $region41
    $region40: #{tpu_custom_call.1} parent=1 // pred_region
      %74 = dma.done [#allocation9], 2048
    $region41: #{tpu_custom_call.1} parent=1 // pred_fallthru
      _
    %v75 = vld [vmem:[#allocation2] sm:$0xff]
    %v76 = vld [vmem:[#allocation7] sm:$0xff]
    %v77 = vld [vmem:[#allocation7 + $0x8] sm:$0xff]
    %v78 = vld [vmem:[#allocation7 + $0x10] sm:$0xff]
    %v79 = vld [vmem:[#allocation7 + $0x18] sm:$0xff]
    %v80 = vld [vmem:[#allocation7 + $0x20] sm:$0xff]
    %v81 = vld [vmem:[#allocation7 + $0x28] sm:$0xff]
    %v82 = vld [vmem:[#allocation7 + $0x30] sm:$0xff]
    %v83 = vld [vmem:[#allocation7 + $0x38] sm:$0xff]
    %v84 = vld [vmem:[#allocation7 + $0x40] sm:$0xff]
    %v85 = vld [vmem:[#allocation7 + $0x48] sm:$0xff]
    %v86 = vld [vmem:[#allocation7 + $0x50] sm:$0xff]
    %v87 = vld [vmem:[#allocation7 + $0x58] sm:$0xff]
    %v88 = vld [vmem:[#allocation7 + $0x60] sm:$0xff]
    %v89 = vld [vmem:[#allocation7 + $0x68] sm:$0xff]
    %v90 = vld [vmem:[#allocation7 + $0x70] sm:$0xff]
    %v91 = vld [vmem:[#allocation7 + $0x78] sm:$0xff]
    %v92 = vld [vmem:[%s3] sm:$0x1]
    %v94 = vlaneseq
    %v95 = vshrl.u32 %v94, 7
    %v96 = vsub.s32 0, %v95
    %v97 = vrot.slane %v92, %v96
    %99 = vmatprep.subr.mxu0 0.0
    %100 = vmatpush1.msra.mxu0 %v76
    %101 = vmatprep.subr.mxu0 0.0
    %102 = vmatpush1.msra.mxu0 %v77
    %103 = vmatprep.subr.mxu0 0.0
    %104 = vmatpush1.msra.mxu0 %v78
    %105 = vmatprep.subr.mxu0 0.0
    %106 = vmatpush1.msra.mxu0 %v79
    %107 = vmatprep.subr.mxu0 0.0
    %108 = vmatpush1.msra.mxu0 %v80
    %109 = vmatprep.subr.mxu0 0.0
    %110 = vmatpush1.msra.mxu0 %v81
    %111 = vmatprep.subr.mxu0 0.0
    %112 = vmatpush1.msra.mxu0 %v82
    %113 = vmatprep.subr.mxu0 0.0
    %114 = vmatpush1.msra.mxu0 %v83
    %115 = vmatprep.subr.mxu0 0.0
    %116 = vmatpush1.msra.mxu0 %v84
    %117 = vmatprep.subr.mxu0 0.0
    %118 = vmatpush1.msra.mxu0 %v85
    %119 = vmatprep.subr.mxu0 0.0
    %120 = vmatpush1.msra.mxu0 %v86
    %121 = vmatprep.subr.mxu0 0.0
    %122 = vmatpush1.msra.mxu0 %v87
    %123 = vmatprep.subr.mxu0 0.0
    %124 = vmatpush1.msra.mxu0 %v88
    %125 = vmatprep.subr.mxu0 0.0
    %126 = vmatpush1.msra.mxu0 %v89
    %127 = vmatprep.subr.mxu0 0.0
    %128 = vmatpush1.msra.mxu0 %v90
    %129 = vmatprep.subr.mxu0 0.0
    %130 = vmatpush1.msra.mxu0 %v91
    %131 = vmatprep.subr.mxu0 0.0
    %132 = vmatpush1.msra.mxu0 0.0
    %133 = vmatprep.subr.mxu0 0.0
    %134 = vmatpush1.msra.mxu0 0.0
    %135 = vmatprep.subr.mxu0 0.0
    %136 = vmatpush1.msra.mxu0 0.0
    %137 = vmatprep.subr.mxu0 0.0
    %138 = vmatpush1.msra.mxu0 0.0
    %139 = vmatprep.subr.mxu0 0.0
    %140 = vmatpush1.msra.mxu0 0.0
    %141 = vmatprep.subr.mxu0 0.0
    %142 = vmatpush1.msra.mxu0 0.0
    %143 = vmatprep.subr.mxu0 0.0
    %144 = vmatpush1.msra.mxu0 0.0
    %145 = vmatprep.subr.mxu0 0.0
    %146 = vmatpush1.msra.mxu0 0.0
    %147 = vmatprep.subr.mxu0 0.0
    %148 = vmatpush1.msra.mxu0 0.0
    %149 = vmatprep.subr.mxu0 0.0
    %150 = vmatpush1.msra.mxu0 0.0
    %151 = vmatprep.subr.mxu0 0.0
    %152 = vmatpush1.msra.mxu0 0.0
    %153 = vmatprep.subr.mxu0 0.0
    %154 = vmatpush1.msra.mxu0 0.0
    %155 = vmatprep.subr.mxu0 0.0
    %156 = vmatpush1.msra.mxu0 0.0
    %157 = vmatprep.subr.mxu0 0.0
    %158 = vmatpush1.msra.mxu0 0.0
    %159 = vmatprep.subr.mxu0 0.0
    %160 = vmatpush1.msra.mxu0 0.0
    %161 = vmatprep.subr.mxu0 0.0
    %162 = vmatpush1.msra.mxu0 0.0
    %163 = vmatprep.mubr.f32.mxu0 0.0
    %164 = vmatmul.mubr.f32.gmra.mrb[0].mxu0 %v75
    %v165 = vpop.f32.mrb[0].mxu0
    %v166 = vadd.f32 %v97, %v165
    %v167 = vpop.f32.mrb[0].mxu0
    %168 = vdwg.mxu0
    %v169 = vmax.f32 %v166, 0.0
    %v170 = vld [vmem:[#allocation5] sm:$0xff]
    %v171 = vmul.f32 %v169, %v170
    %v172 = vld [vmem:[#allocation8] sm:$0xff]
    %v173 = vld [vmem:[#allocation8 + $0x8] sm:$0xff]
    %v174 = vld [vmem:[#allocation8 + $0x10] sm:$0xff]
    %v175 = vld [vmem:[#allocation8 + $0x18] sm:$0xff]
    %v176 = vld [vmem:[#allocation8 + $0x20] sm:$0xff]
    %v177 = vld [vmem:[#allocation8 + $0x28] sm:$0xff]
    %v178 = vld [vmem:[#allocation8 + $0x30] sm:$0xff]
    %v179 = vld [vmem:[#allocation8 + $0x38] sm:$0xff]
    %v180 = vld [vmem:[#allocation8 + $0x40] sm:$0xff]
    %v181 = vld [vmem:[#allocation8 + $0x48] sm:$0xff]
    %v182 = vld [vmem:[#allocation8 + $0x50] sm:$0xff]
    %v183 = vld [vmem:[#allocation8 + $0x58] sm:$0xff]
    %v184 = vld [vmem:[#allocation8 + $0x60] sm:$0xff]
    %v185 = vld [vmem:[#allocation8 + $0x68] sm:$0xff]
    %v186 = vld [vmem:[#allocation8 + $0x70] sm:$0xff]
    %v187 = vld [vmem:[#allocation8 + $0x78] sm:$0xff]
    %v188 = vld [vmem:[%s5] sm:$0x1]
    %v190 = vlaneseq
    %v191 = vshrl.u32 %v190, 7
    %v192 = vsub.s32 0, %v191
    %v193 = vrot.slane %v188, %v192
    %195 = vmatprep.subr.mxu0 0.0
    %196 = vmatpush1.msra.mxu0 %v172
    %197 = vmatprep.subr.mxu0 0.0
    %198 = vmatpush1.msra.mxu0 %v173
    %199 = vmatprep.subr.mxu0 0.0
    %200 = vmatpush1.msra.mxu0 %v174
    %201 = vmatprep.subr.mxu0 0.0
    %202 = vmatpush1.msra.mxu0 %v175
    %203 = vmatprep.subr.mxu0 0.0
    %204 = vmatpush1.msra.mxu0 %v176
    %205 = vmatprep.subr.mxu0 0.0
    %206 = vmatpush1.msra.mxu0 %v177
    %207 = vmatprep.subr.mxu0 0.0
    %208 = vmatpush1.msra.mxu0 %v178
    %209 = vmatprep.subr.mxu0 0.0
    %210 = vmatpush1.msra.mxu0 %v179
    %211 = vmatprep.subr.mxu0 0.0
    %212 = vmatpush1.msra.mxu0 %v180
    %213 = vmatprep.subr.mxu0 0.0
    %214 = vmatpush1.msra.mxu0 %v181
    %215 = vmatprep.subr.mxu0 0.0
    %216 = vmatpush1.msra.mxu0 %v182
    %217 = vmatprep.subr.mxu0 0.0
    %218 = vmatpush1.msra.mxu0 %v183
    %219 = vmatprep.subr.mxu0 0.0
    %220 = vmatpush1.msra.mxu0 %v184
    %221 = vmatprep.subr.mxu0 0.0
    %222 = vmatpush1.msra.mxu0 %v185
    %223 = vmatprep.subr.mxu0 0.0
    %224 = vmatpush1.msra.mxu0 %v186
    %225 = vmatprep.subr.mxu0 0.0
    %226 = vmatpush1.msra.mxu0 %v187
    %227 = vmatprep.subr.mxu0 0.0
    %228 = vmatpush1.msra.mxu0 0.0
    %229 = vmatprep.subr.mxu0 0.0
    %230 = vmatpush1.msra.mxu0 0.0
    %231 = vmatprep.subr.mxu0 0.0
    %232 = vmatpush1.msra.mxu0 0.0
    %233 = vmatprep.subr.mxu0 0.0
    %234 = vmatpush1.msra.mxu0 0.0
    %235 = vmatprep.subr.mxu0 0.0
    %236 = vmatpush1.msra.mxu0 0.0
    %237 = vmatprep.subr.mxu0 0.0
    %238 = vmatpush1.msra.mxu0 0.0
    %239 = vmatprep.subr.mxu0 0.0
    %240 = vmatpush1.msra.mxu0 0.0
    %241 = vmatprep.subr.mxu0 0.0
    %242 = vmatpush1.msra.mxu0 0.0
    %243 = vmatprep.subr.mxu0 0.0
    %244 = vmatpush1.msra.mxu0 0.0
    %245 = vmatprep.subr.mxu0 0.0
    %246 = vmatpush1.msra.mxu0 0.0
    %247 = vmatprep.subr.mxu0 0.0
    %248 = vmatpush1.msra.mxu0 0.0
    %249 = vmatprep.subr.mxu0 0.0
    %250 = vmatpush1.msra.mxu0 0.0
    %251 = vmatprep.subr.mxu0 0.0
    %252 = vmatpush1.msra.mxu0 0.0
    %253 = vmatprep.subr.mxu0 0.0
    %254 = vmatpush1.msra.mxu0 0.0
    %255 = vmatprep.subr.mxu0 0.0
    %256 = vmatpush1.msra.mxu0 0.0
    %257 = vmatprep.subr.mxu0 0.0
    %258 = vmatpush1.msra.mxu0 0.0
    %259 = vmatprep.mubr.f32.mxu0 0.0
    %260 = vmatmul.mubr.f32.gmra.mrb[0].mxu0 %v171
    %v261 = vpop.f32.mrb[0].mxu0
    %v262 = vadd.f32 %v193, %v261
    %v263 = vpop.f32.mrb[0].mxu0
    %264 = vdwg.mxu0
    %265 = vst [vmem:[#allocation10] sm:$0xff] %v262
    // Predicated region
    $region42: #{tpu_custom_call.1} parent=1 // pred_check
      _
    $region43: #{tpu_custom_call.1} parent=1 // pred_check_branch
      %267 = sbr.rel (0) target = $region45
    $region44: #{tpu_custom_call.1} parent=1 // pred_region
      %s269 = ssub.s32 128, 128
      %270 = vsyncadd [#allocation4], %s269
      %s272 = sshll.u32 [#allocation10], 4
      %s273 = int_to_ptr.vmem [resolvable:$true] %s272
      %275 = dma.vmem_to_hbm [thread:$0]  %s273, 128, %s6, [#allocation4]
    $region45: #{tpu_custom_call.1} parent=1 // pred_fallthru
      _
    // Predicated region
    $region46: #{tpu_custom_call.1} parent=1 // pred_check
      _
    $region47: #{tpu_custom_call.1} parent=1 // pred_check_branch
      %277 = sbr.rel (0) target = $region49
    $region48: #{tpu_custom_call.1} parent=1 // pred_region
      %278 = dma.done [#allocation4], 128
    $region49: #{tpu_custom_call.1} parent=1 // pred_fallthru
      _
    %279 = vsyncpa [#allocation3], 1
    %280 = vsyncpa [#allocation6], 1
    %281 = vsyncpa [#allocation9], 1
    %282 = vsyncpa [#allocation4], 1

</llo_original>
